<compile_context>
chip_gen: v7x
topology: tpu7x:2x2x1
jax: 0.10.0
libtpu: 0.0.40
codegen_flags: <defaults>
</compile_context>

<pallas_src>
import jax
import jax.numpy as jnp
from jax import lax
from jax.experimental import pallas as pl
from jax.experimental.pallas import tpu as pltpu


def _round_up(v, m):
    return (v + m - 1) // m * m


def _block_spec(shape, index_map, buffers=None):
    """BlockSpec helper; `buffers` requests an explicit pipeline depth."""
    if buffers is None:
        return pl.BlockSpec(shape, index_map)
    try:
        return pl.BlockSpec(shape, index_map, pipeline_mode=pl.Buffered(buffers))
    except TypeError:  # older jax without pipeline_mode: use the default depth
        return pl.BlockSpec(shape, index_map)


def _vmem_capacity_bytes():
    try:
        return int(pltpu.get_tpu_info().vmem_capacity_bytes)
    except Exception:
        return 64 * 1024 * 1024  # conservative (v7x-sized) fallback


def _patch_embed_kernel(p_ref, w_ref, b_ref, o_ref):
    # p_ref: (tm, K) bf16 patches, w_ref: (K, tn) bf16 projection,
    # b_ref: (1, tn) f32 bias, o_ref: (tm, tn) output.
    acc = jnp.dot(p_ref[...], w_ref[...], preferred_element_type=jnp.float32)
    o_ref[...] = (acc + b_ref[...]).astype(o_ref.dtype)


def patch_embed_pallas(x, weight, bias, patch_size, *, tokens=False,
                       out_dtype=None, tm_target=1024):
    """Conv3d(stride == kernel_size == patch_size) patch embedding.

    x: (N, C, D, H, W); weight: (E, C, p, p, p); bias: (E,).
    Returns (N, E, Do, Ho, Wo) (PyTorch Conv3d layout, default) or, with
    tokens=True, the ViT-style (N, Do*Ho*Wo, E) layout with no extra transpose.
    """
    N, C, D, H, W = x.shape
    E = weight.shape[0]
    p = patch_size
    assert D % p == 0 and H % p == 0 and W % p == 0, "volume must divide patch_size"
    Do, Ho, Wo = D // p, H // p, W // p
    M = N * Do * Ho * Wo
    K = C * p * p * p
    out_dtype = x.dtype if out_dtype is None else out_dtype
    out_isize = jnp.dtype(out_dtype).itemsize

    # Lane padding only on the embedding axis (256-wide MXU columns on v6e/v7x).
    Ep = _round_up(E, 256 if E > 128 else 128)

    # ---- per-generation VMEM budget and tile plan ----
    cap = _vmem_capacity_bytes()
    vmem_limit = int(cap * 0.85)
    fit_budget = int(cap * 0.70)

    sub = 16                                                   # bf16 sublane packing
    n_m = max(pl.cdiv(M, tm_target), 2 if M > sub else 1)      # >=2 steps -> both TCs busy
    tm = _round_up(pl.cdiv(M, n_m), sub)
    tm = min(tm, _round_up(M, 8))                              # never exceed the array
    tn = Ep

    def _vmem_plan(tm_, tn_):
        w_b = K * tn_ * 2                          # weight tile, single buffered
        b_b = 8 * tn_ * 4                          # bias tile (sublane padded)
        p_b = 2 * tm_ * _round_up(K, 128) * 2      # double-buffered patch tiles
        o_b = 2 * tm_ * tn_ * out_isize            # double-buffered output tiles
        return w_b + b_b + p_b + o_b

    # Shrink the E tile first (keeps the patch stream / GEMM rows big), then tm.
    while _vmem_plan(tm, tn) > fit_budget and tn > 256 and tn % 256 == 0:
        tn //= 2
    while _vmem_plan(tm, tn) > fit_budget and tm > sub:
        tm = _round_up(tm // 2, sub)

    n_m = pl.cdiv(M, tm)
    n_e = Ep // tn

    # ---- glue: fused bf16 cast + patch gather (single XLA pass over x) ----
    xb = x.astype(jnp.bfloat16)
    patches = xb.reshape(N, C, Do, p, Ho, p, Wo, p)
    patches = patches.transpose(0, 2, 4, 6, 1, 3, 5, 7).reshape(M, K)

    w2d = weight.reshape(E, K).T.astype(jnp.bfloat16)          # (K, E), same K order
    b2d = bias.reshape(1, E).astype(jnp.float32)
    if Ep != E:
        w2d = jnp.pad(w2d, ((0, 0), (0, Ep - E)))
        b2d = jnp.pad(b2d, ((0, 0), (0, Ep - E)))

    out = pl.pallas_call(
        _patch_embed_kernel,
        out_shape=jax.ShapeDtypeStruct((M, Ep), out_dtype),
        grid_spec=pltpu.PrefetchScalarGridSpec(
            num_scalar_prefetch=0,
            grid=(n_e, n_m),            # E-tiles outer (weight fetched once per tile)
            in_specs=[
                pl.BlockSpec((tm, K), lambda e, m: (m, 0)),            # patch stream
                _block_spec((K, tn), lambda e, m: (0, e), buffers=1),  # ~resident weight
                _block_spec((1, tn), lambda e, m: (0, e), buffers=1),  # ~resident bias
            ],
            out_specs=pl.BlockSpec((tm, tn), lambda e, m: (m, e)),
        ),
        compiler_params=pltpu.CompilerParams(
            dimension_semantics=("parallel", "parallel"),
            vmem_limit_bytes=vmem_limit,
        ),
        cost_estimate=pl.CostEstimate(
            flops=2 * M * K * Ep,
            transcendentals=0,
            bytes_accessed=(M * K * 2 + K * Ep * 2 + Ep * 4 + M * Ep * out_isize),
        ),
    )(patches, w2d, b2d)

    if Ep != E:
        out = out[:, :E]
    if tokens:
        # ViT-style (N, L, E): no layout transpose at all.
        return out.reshape(N, Do * Ho * Wo, E)
    # PyTorch Conv3d output layout (module parity): (N, E, Do, Ho, Wo).
    return out.reshape(N, Do, Ho, Wo, E).transpose(0, 4, 1, 2, 3)


if __name__ == "__main__":
    # Small, Conv3d-consistent shapes: N=2, in_chans=3, 16^3 volume, p=4, E=32.
    N, C, D, H, W = 2, 3, 16, 16, 16
    p, E = 4, 32

    key = jax.random.PRNGKey(0)
    kx, kw, kb = jax.random.split(key, 3)
    x = jax.random.normal(kx, (N, C, D, H, W), dtype=jnp.float32)
    # Deterministic synthetic Conv3d parameters (shapes match nn.Conv3d).
    weight = jax.random.normal(kw, (E, C, p, p, p), dtype=jnp.float32) * 0.02
    bias = jax.random.normal(kb, (E,), dtype=jnp.float32) * 0.02

    out = jax.block_until_ready(patch_embed_pallas(x, weight, bias, p))
    tok = jax.block_until_ready(patch_embed_pallas(x, weight, bias, p, tokens=True))

    # Independent reference: XLA 3-D convolution (NCDHW), f32.
    ref = lax.conv_general_dilated(
        x, weight, window_strides=(p, p, p), padding="VALID",
        dimension_numbers=("NCDHW", "OIDHW", "NCDHW"),
    ) + bias.reshape(1, E, 1, 1, 1)

    Do, Ho, Wo = D // p, H // p, W // p
    assert out.shape == (N, E, Do, Ho, Wo)
    assert tok.shape == (N, Do * Ho * Wo, E)
    # bf16 operands with f32 accumulation -> slightly looser tolerance.
    assert jnp.allclose(out, ref, atol=2e-2, rtol=2e-2)
    ref_tok = ref.reshape(N, E, -1).transpose(0, 2, 1)
    assert jnp.allclose(tok, ref_tok, atol=2e-2, rtol=2e-2)
    print("KERNEL_OK")
</pallas_src>

<mosaic_0001>
module attributes {stable_mosaic.version = 11 : i64} {
  func.func @_patch_embed_kernel(%arg0: i32, %arg1: i32, %arg2: memref<64x192xbf16, #tpu.memory_space<vmem>>, %arg3: memref<192x128xbf16, #tpu.memory_space<vmem>>, %arg4: memref<1x128xf32, #tpu.memory_space<vmem>>, %arg5: memref<64x128xf32, #tpu.memory_space<vmem>>) attributes {dimension_semantics = [#tpu.dimension_semantics<parallel>, #tpu.dimension_semantics<parallel>], iteration_bounds = array<i64: 1, 2>, scalar_prefetch = 0 : i64, scratch_operands = 0 : i64, tpu.core_type = #tpu.core_type<tc>, window_params = [{transform_indices = @transform_0, window_bounds = array<i64: 64, 192>}, {pipeline_mode = #tpu.pipeline_mode<synchronous>, transform_indices = @transform_1, window_bounds = array<i64: 192, 128>}, {pipeline_mode = #tpu.pipeline_mode<synchronous>, transform_indices = @transform_2, window_bounds = array<i64: 1, 128>}, {transform_indices = @transform_3, window_bounds = array<i64: 64, 128>}]} {
    %c0 = arith.constant 0 : index
    %c0_0 = arith.constant 0 : index
    %0 = vector.load %arg2[%c0, %c0_0] : memref<64x192xbf16, #tpu.memory_space<vmem>>, vector<64x192xbf16>
    %c0_1 = arith.constant 0 : index
    %c0_2 = arith.constant 0 : index
    %1 = vector.load %arg3[%c0_1, %c0_2] : memref<192x128xbf16, #tpu.memory_space<vmem>>, vector<192x128xbf16>
    %cst = arith.constant dense<0.000000e+00> : vector<64x128xf32>
    %2 = tpu.matmul %0, %1, %cst {dimension_numbers = #tpu.dot_dimension_numbers<[1], [0], [0], [1], [0, 0, 1, 1], [], []>} : vector<64x192xbf16>, vector<192x128xbf16>, vector<64x128xf32> -> vector<64x128xf32>
    %c0_3 = arith.constant 0 : index
    %c0_4 = arith.constant 0 : index
    %3 = vector.load %arg4[%c0_3, %c0_4] : memref<1x128xf32, #tpu.memory_space<vmem>>, vector<1x128xf32>
    %4 = vector.broadcast %3 : vector<1x128xf32> to vector<64x128xf32>
    %5 = arith.addf %2, %4 : vector<64x128xf32>
    %c0_5 = arith.constant 0 : index
    %c0_6 = arith.constant 0 : index
    %6 = vector.load %arg5[%c0_5, %c0_6] : memref<64x128xf32, #tpu.memory_space<vmem>>, vector<64x128xf32>
    tpu.vector_store %arg5[%c0_5, %c0_6], %5 {strides = array<i32>} : memref<64x128xf32, #tpu.memory_space<vmem>>, vector<64x128xf32>,
    return
  }
  func.func @transform_0(%arg0: i32, %arg1: i32) -> (i32, i32) {
    %c0_i32 = arith.constant 0 : i32
    %c0_i32_0 = arith.constant 0 : i32
    return %arg1, %c0_i32 : i32, i32
  }
  func.func @transform_1(%arg0: i32, %arg1: i32) -> (i32, i32) {
    %c0_i32 = arith.constant 0 : i32
    %c0_i32_0 = arith.constant 0 : i32
    return %c0_i32, %arg0 : i32, i32
  }
  func.func @transform_2(%arg0: i32, %arg1: i32) -> (i32, i32) {
    %c0_i32 = arith.constant 0 : i32
    %c0_i32_0 = arith.constant 0 : i32
    return %c0_i32, %arg0 : i32, i32
  }
  func.func @transform_3(%arg0: i32, %arg1: i32) -> (i32, i32) {
    %c0_i32 = arith.constant 0 : i32
    return %arg1, %arg0 : i32, i32
  }
}

</mosaic_0001>

<llo_original>
// kernel: tpu_custom_call.1
$region0: #{tpu_custom_call.1}
  #allocation0 [shape = 'u32[]', space=smem, size = 0x4, offset = 0x4, fixed_abs, tag = 'smem constant byte address 0x4 - core index']
  #allocation1 [shape = 'u32[144,128]{1,0:T(1,128)}', space=vmem, size = 0x12000, scoped, tag = 'internal scratch']
  %s0 = inlined_call_operand.vmem [shape: bf16[128,192], index: 0, kind: input, shape index: {}]
  %s1 = inlined_call_operand.vmem [shape: bf16[192,128], index: 1, kind: input, shape index: {}]
  %s2 = inlined_call_operand.vmem [shape: f32[1,128], index: 2, kind: input, shape index: {}]
  %s3 = inlined_call_operand.hbm [shape: f32[128,128], index: 3, kind: output, shape index: {}]
  %s4 = sld [smem:[#allocation0]]
  $region45: #{tpu_custom_call.1} parent=0
    _
  %s6 = ssub.s32 1, %s4
  %s7 = scalar_select 0, %s6, %s4
  $region1: #{tpu_custom_call.1} parent=0
    #allocation2 [shape = 'u8[65536]{0}', space=vmem, size = 0x10000, scoped, tag = 'output window, operand 0']
    #allocation3 [shape = 's32[2]{0}', space=sflag, size = 0x8, scoped, tag = 'scoped memory for tpu_custom_call.1']
    %8 = vsyncpa [#allocation3], 0
    %s9 = scalar_lea.sflag [#allocation3], 1
    %10 = vsyncpa %s9, 0
    loop: start=0, step=1, limit=4
    $region2: #{tpu_custom_call.1} parent=1 // loop_pre_header
      _
    $region3: #{tpu_custom_call.1} parent=1 // loop_header
      %s12 = sphi 0, %s16
      %p13 = scmp.ge.s32.totalorder %s12, 4
      %s19 = sphi 0, %s31
      %s20 = sphi 0, %s27
      %s21 = sphi 0, %s19
      %s22 = sphi 0, %s20
      %s23 = sphi 0, %s21
      %s24 = sphi 0, %s22
      %s34 = sphi 0, %s36
      %s37 = sphi 0, %s34
      %s38 = sphi 0, %s37
      %s54 = sphi 0, %s38
      %s60 = sphi 0, %s62
      %s63 = sphi 0, %s60
      %s64 = sphi 0, %s63
      %s80 = sphi 0, %s64
      %s86 = sphi 0, %s88
      %s89 = sphi 0, %s86
      %s90 = sphi 0, %s89
      %s106 = sphi 0, %s90
      %s114 = sphi 0, %s116
      %s117 = sphi 0, %s114
      %s118 = sphi 0, %s117
      %s134 = sphi 0, %s118
    $region4: #{tpu_custom_call.1} parent=1 // loop_header_branch
      %15 = sbr.rel (%p13) target = $region8
    $region5: #{tpu_custom_call.1} parent=1 // loop_body
      %s17 = ssub.s32 %s12, 1
      %s18 = ssub.s32 %s12, 2
      %s25 = sadd.s32 1, %s20
      %p26 = scmp.ge.s32.totalorder %s25, 2
      %s27 = scalar_select %p26, 0, %s25
      %s28 = sadd.s32 1, %s19
      %s29 = scalar_select %p26, %s28, %s19
      %p30 = scmp.ge.s32.totalorder %s29, 1
      %s31 = scalar_select %p30, 0, %s29
      %s32 = ssub.s32 %s20, %s27
      %p33 = scmp.eq.s32.totalorder %s32, 0
      %s35 = sadd.s32 %s34, 1
      %s36 = scalar_select %p33, %s34, %s35
      %p39 = pneg %p33
      %p40 = scmp.eq.s32.totalorder %s12, 1
      %p41 = por %p39, %p40
      %p42 = scmp.ne.s32.totalorder %s34, %s37
      %p43 = scmp.eq.s32.totalorder %s12, 0
      %p44 = por %p42, %p43
      %p45 = scmp.ne.s32.totalorder %s34, %s37
      %p46 = scmp.eq.s32.totalorder %s17, 1
      %p47 = por %p45, %p46
      %p48 = scmp.ne.s32.totalorder %s37, %s38
      %p49 = scmp.eq.s32.totalorder %s17, 0
      %p50 = por %p48, %p49
      %p51 = scmp.ne.s32.totalorder %s37, %s38
      %p52 = scmp.eq.s32.totalorder %s18, 1
      %p53 = por %p51, %p52
      %p55 = scmp.ne.s32.totalorder %s38, %s54
      %p56 = scmp.eq.s32.totalorder %s18, 0
      %p57 = por %p55, %p56
      %s58 = ssub.s32 %s19, %s31
      %p59 = scmp.eq.s32.totalorder %s58, 0
      %s61 = sadd.s32 %s60, 1
      %s62 = scalar_select %p59, %s60, %s61
      %p65 = pneg %p59
      %p66 = scmp.eq.s32.totalorder %s12, 1
      %p67 = por %p65, %p66
      %p68 = scmp.ne.s32.totalorder %s60, %s63
      %p69 = scmp.eq.s32.totalorder %s12, 0
      %p70 = por %p68, %p69
      %p71 = scmp.ne.s32.totalorder %s60, %s63
      %p72 = scmp.eq.s32.totalorder %s17, 1
      %p73 = por %p71, %p72
      %p74 = scmp.ne.s32.totalorder %s63, %s64
      %p75 = scmp.eq.s32.totalorder %s17, 0
      %p76 = por %p74, %p75
      %p77 = scmp.ne.s32.totalorder %s63, %s64
      %p78 = scmp.eq.s32.totalorder %s18, 1
      %p79 = por %p77, %p78
      %p81 = scmp.ne.s32.totalorder %s64, %s80
      %p82 = scmp.eq.s32.totalorder %s18, 0
      %p83 = por %p81, %p82
      %s84 = ssub.s32 %s19, %s31
      %p85 = scmp.eq.s32.totalorder %s84, 0
      %s87 = sadd.s32 %s86, 1
      %s88 = scalar_select %p85, %s86, %s87
      %p91 = pneg %p85
      %p92 = scmp.eq.s32.totalorder %s12, 1
      %p93 = por %p91, %p92
      %p94 = scmp.ne.s32.totalorder %s86, %s89
      %p95 = scmp.eq.s32.totalorder %s12, 0
      %p96 = por %p94, %p95
      %p97 = scmp.ne.s32.totalorder %s86, %s89
      %p98 = scmp.eq.s32.totalorder %s17, 1
      %p99 = por %p97, %p98
      %p100 = scmp.ne.s32.totalorder %s89, %s90
      %p101 = scmp.eq.s32.totalorder %s17, 0
      %p102 = por %p100, %p101
      %p103 = scmp.ne.s32.totalorder %s89, %s90
      %p104 = scmp.eq.s32.totalorder %s18, 1
      %p105 = por %p103, %p104
      %p107 = scmp.ne.s32.totalorder %s90, %s106
      %p108 = scmp.eq.s32.totalorder %s18, 0
      %p109 = por %p107, %p108
      %s110 = ssub.s32 %s20, %s27
      %s111 = ssub.s32 %s19, %s31
      %s112 = sor.u32 %s110, %s111
      %p113 = scmp.eq.s32.totalorder %s112, 0
      %s115 = sadd.s32 %s114, 1
      %s116 = scalar_select %p113, %s114, %s115
      %p119 = pneg %p113
      %p120 = scmp.eq.s32.totalorder %s12, 1
      %p121 = por %p119, %p120
      %p122 = scmp.ne.s32.totalorder %s114, %s117
      %p123 = scmp.eq.s32.totalorder %s12, 0
      %p124 = por %p122, %p123
      %p125 = scmp.ne.s32.totalorder %s114, %s117
      %p126 = scmp.eq.s32.totalorder %s17, 1
      %p127 = por %p125, %p126
      %p128 = scmp.ne.s32.totalorder %s117, %s118
      %p129 = scmp.eq.s32.totalorder %s17, 0
      %p130 = por %p128, %p129
      %p131 = scmp.ne.s32.totalorder %s117, %s118
      %p132 = scmp.eq.s32.totalorder %s18, 1
      %p133 = por %p131, %p132
      %p135 = scmp.ne.s32.totalorder %s118, %s134
      %p136 = scmp.eq.s32.totalorder %s18, 0
      %p137 = por %p135, %p136
      %p138 = scmp.le.s32.totalorder 1, %s12
      %p139 = scmp.lt.s32.totalorder %s12, 3
      %p140 = pnand %p138, %p139
      %p141 = pneg %p140
      // Predicated region
      $region9: #{tpu_custom_call.1} parent=5 // pred_check
        _
      $region10: #{tpu_custom_call.1} parent=5 // pred_check_branch
        %143 = sbr.rel (%p140) target = $region12
      $region11: #{tpu_custom_call.1} parent=5 // pred_region
        %s144 = ssub.s32 %s12, 1
        // Predicated region
        $region13: #{tpu_custom_call.1} parent=11 // pred_check
          %p145 = pneg %p76
        $region14: #{tpu_custom_call.1} parent=11 // pred_check_branch
          %147 = sbr.rel (%p145) target = $region16
        $region15: #{tpu_custom_call.1} parent=11 // pred_region
          %p148 = scmp.lt.s32.totalorder %s21, 0
          %s149 = scalar_select %p148, %s21, 0
          %s150 = smul.addr %s149, 4
          %s151 = scalar_lea.vmem %s1, %s150
        $region16: #{tpu_custom_call.1} parent=11 // pred_fallthru
          _
        // Predicated region
        $region17: #{tpu_custom_call.1} parent=11 // pred_check
          %p152 = pneg %p102
        $region18: #{tpu_custom_call.1} parent=11 // pred_check_branch
          %154 = sbr.rel (%p152) target = $region20
        $region19: #{tpu_custom_call.1} parent=11 // pred_region
          %p155 = scmp.lt.s32.totalorder %s21, 0
          %s156 = scalar_select %p155, %s21, 0
          %s157 = scalar_lea.vmem %s2, %s156
        $region20: #{tpu_custom_call.1} parent=11 // pred_fallthru
          _
      $region12: #{tpu_custom_call.1} parent=5 // pred_fallthru
        _
      %p158 = scmp.lt.s32.totalorder %s12, 2
      // Predicated region
      $region21: #{tpu_custom_call.1} parent=5 // pred_check
        %p159 = pneg %p158
      $region22: #{tpu_custom_call.1} parent=5 // pred_check_branch
        %161 = sbr.rel (%p159) target = $region24
      $region23: #{tpu_custom_call.1} parent=5 // pred_region
        // Predicated region
        $region25: #{tpu_custom_call.1} parent=23 // pred_check
          %p162 = pneg %p44
        $region26: #{tpu_custom_call.1} parent=23 // pred_check_branch
          %164 = sbr.rel (%p162) target = $region28
        $region27: #{tpu_custom_call.1} parent=23 // pred_region
          %s165 = smul.u32 8, %s20
          %p166 = scmp.lt.s32.totalorder %s165, 15
          %s167 = scalar_select %p166, %s165, 15
          %s168 = smul.addr %s167, 2
          %s169 = smul.addr %s168, 4
          %s170 = scalar_lea.vmem %s0, %s169
          %s171 = smul.u32 8, %s20
        $region28: #{tpu_custom_call.1} parent=23 // pred_fallthru
          _
      $region24: #{tpu_custom_call.1} parent=5 // pred_fallthru
        _
      %p172 = scmp.le.s32.totalorder 1, %s12
      %p173 = scmp.lt.s32.totalorder %s12, 3
      %p174 = pnand %p172, %p173
      %p175 = pneg %p174
      // Predicated region
      $region29: #{tpu_custom_call.1} parent=5 // pred_check
        _
      $region30: #{tpu_custom_call.1} parent=5 // pred_check_branch
        %177 = sbr.rel (%p174) target = $region32
      $region31: #{tpu_custom_call.1} parent=5 // pred_region
        %s178 = ssub.s32 %s12, 1
        %s179 = smul.u32 8, %s22
        %p180 = scmp.lt.s32.totalorder %s179, 15
        %s181 = scalar_select %p180, %s179, 15
        %s182 = smul.addr %s181, 2
        %s183 = smul.addr %s182, 4
        %s184 = scalar_lea.vmem %s0, %s183
        %p185 = pneg %p50
        %p186 = pneg %p47
        %p187 = scmp.lt.s32.totalorder %s21, 0
        %s188 = scalar_select %p187, %s21, 0
        %s189 = smul.addr %s188, 4
        %s190 = scalar_lea.vmem %s1, %s189
        %p191 = pneg %p76
        %p192 = pneg %p73
        %p193 = scmp.lt.s32.totalorder %s21, 0
        %s194 = scalar_select %p193, %s21, 0
        %s195 = scalar_lea.vmem %s2, %s194
        %p196 = pneg %p102
        %p197 = pneg %p99
        %p198 = pneg %p130
        %p199 = pneg %p127
        %s200 = sand.u32 %s117, 1
        %s201 = scalar_lea.sflag [#allocation3], %s200
        %s202 = sand.u32 %s117, 1
        %s203 = smul.addr %s202, 64
        %s204 = scalar_lea.vmem [#allocation2], %s203
        %s205 = smul.u32 8, %s22
        %p206 = scmp.lt.s32.totalorder %s205, 15
        %s207 = scalar_select %p206, %s205, 15
        %s208 = smul.addr %s207, 2
        %s209 = smul.addr %s208, 4
        %s210 = scalar_lea.vmem %s0, %s209
        %s211 = smul.u32 8, %s22
        %p212 = scmp.lt.s32.totalorder %s21, 0
        %s213 = scalar_select %p212, %s21, 0
        %s214 = smul.addr %s213, 4
        %s215 = scalar_lea.vmem %s1, %s214
        %p216 = scmp.lt.s32.totalorder %s21, 0
        %s217 = scalar_select %p216, %s21, 0
        %s218 = scalar_lea.vmem %s2, %s217
        %s219 = smul.u32 8, %s22
        %v221 = vld [vmem:[%s210] sm:$0xff]
        %v222 = vld [vmem:[%s210 + $0x8] sm:$0xff]
        %v223 = vld [vmem:[%s210 + $0x10] sm:$0xff]
        %v224 = vld [vmem:[%s210 + $0x18] sm:$0xff]
        %v225 = vld [vmem:[%s210 + $0x20] sm:$0xff]
        %v226 = vld [vmem:[%s210 + $0x28] sm:$0xff]
        %v227 = vld [vmem:[%s210 + $0x30] sm:$0xff]
        %v228 = vld [vmem:[%s210 + $0x38] sm:$0xff]
        %v229 = vld [vmem:[%s215] sm:$0xf]
        %v230 = vld [vmem:[%s215 + $0x4] sm:$0xf]
        %v231 = vld [vmem:[%s215 + $0x8] sm:$0xf]
        %v232 = vld [vmem:[%s215 + $0xc] sm:$0xf]
        %v233 = vld [vmem:[%s215 + $0x10] sm:$0xf]
        %v234 = vld [vmem:[%s215 + $0x14] sm:$0xf]
        %v235 = vld [vmem:[%s215 + $0x18] sm:$0xf]
        %v236 = vld [vmem:[%s215 + $0x1c] sm:$0xf]
        %v237 = vld [vmem:[%s215 + $0x20] sm:$0xf]
        %v238 = vld [vmem:[%s215 + $0x24] sm:$0xf]
        %v239 = vld [vmem:[%s215 + $0x28] sm:$0xf]
        %v240 = vld [vmem:[%s215 + $0x2c] sm:$0xf]
        %v241 = vld [vmem:[%s215 + $0x30] sm:$0xf]
        %v242 = vld [vmem:[%s215 + $0x34] sm:$0xf]
        %v243 = vld [vmem:[%s215 + $0x38] sm:$0xf]
        %v244 = vld [vmem:[%s215 + $0x3c] sm:$0xf]
        %v245 = vld [vmem:[%s215 + $0x40] sm:$0xf]
        %v246 = vld [vmem:[%s215 + $0x44] sm:$0xf]
        %v247 = vld [vmem:[%s215 + $0x48] sm:$0xf]
        %v248 = vld [vmem:[%s215 + $0x4c] sm:$0xf]
        %v249 = vld [vmem:[%s215 + $0x50] sm:$0xf]
        %v250 = vld [vmem:[%s215 + $0x54] sm:$0xf]
        %v251 = vld [vmem:[%s215 + $0x58] sm:$0xf]
        %v252 = vld [vmem:[%s215 + $0x5c] sm:$0xf]
        %v253 = vld [vmem:[%s218] sm:$0x1]
        %v255 = vlaneseq
        %v256 = vshrl.u32 %v255, 7
        %v257 = vsub.s32 0, %v256
        %v258 = vrot.slane %v253, %v257
        %v268 = vunpack.c.l.b16 %v221
        %v269 = vunpack.c.h.b16 %v221
        %v270 = vunpack.c.l.b16 %v222
        %v271 = vunpack.c.h.b16 %v222
        %v272 = vunpack.c.l.b16 %v223
        %v273 = vunpack.c.h.b16 %v223
        %v274 = vunpack.c.l.b16 %v224
        %v275 = vunpack.c.h.b16 %v224
        %v276 = vunpack.c.l.b16 %v225
        %v277 = vunpack.c.h.b16 %v225
        %v278 = vunpack.c.l.b16 %v226
        %v279 = vunpack.c.h.b16 %v226
        %v280 = vunpack.c.l.b16 %v227
        %v281 = vunpack.c.h.b16 %v227
        %v282 = vunpack.c.l.b16 %v228
        %v283 = vunpack.c.h.b16 %v228
        %v284 = vpack.c.b16 %v270, %v268
        %v285 = vpack.c.b16 %v271, %v269
        %v286 = vpack.c.b16 %v274, %v272
        %v287 = vpack.c.b16 %v275, %v273
        %v288 = vpack.c.b16 %v278, %v276
        %v289 = vpack.c.b16 %v279, %v277
        %v290 = vpack.c.b16 %v282, %v280
        %v291 = vpack.c.b16 %v283, %v281
        %v320 = vunpack.c.l.b16 %v229
        %v321 = vunpack.c.l.b16 %v230
        %v322 = vunpack.c.l.b16 %v231
        %v323 = vunpack.c.l.b16 %v232
        %v324 = vunpack.c.l.b16 %v233
        %v325 = vunpack.c.l.b16 %v234
        %v326 = vunpack.c.l.b16 %v235
        %v327 = vunpack.c.l.b16 %v236
        %v328 = vunpack.c.l.b16 %v237
        %v329 = vunpack.c.l.b16 %v238
        %v330 = vunpack.c.l.b16 %v239
        %v331 = vunpack.c.l.b16 %v240
        %v332 = vunpack.c.l.b16 %v241
        %v333 = vunpack.c.l.b16 %v242
        %v334 = vunpack.c.l.b16 %v243
        %v335 = vunpack.c.l.b16 %v244
        %v336 = vunpack.c.l.b16 %v245
        %v337 = vunpack.c.l.b16 %v246
        %v338 = vunpack.c.l.b16 %v247
        %v339 = vunpack.c.l.b16 %v248
        %v340 = vunpack.c.l.b16 %v249
        %v341 = vunpack.c.l.b16 %v250
        %v342 = vunpack.c.l.b16 %v251
        %v343 = vunpack.c.l.b16 %v252
        %v344 = vpack.c.b16 %v321, %v320
        %v345 = vpack.c.b16 %v323, %v322
        %v346 = vpack.c.b16 %v325, %v324
        %v347 = vpack.c.b16 %v327, %v326
        %v348 = vpack.c.b16 %v329, %v328
        %v349 = vpack.c.b16 %v331, %v330
        %v350 = vpack.c.b16 %v333, %v332
        %v351 = vpack.c.b16 %v335, %v334
        %v352 = vpack.c.b16 %v337, %v336
        %v353 = vpack.c.b16 %v339, %v338
        %v354 = vpack.c.b16 %v341, %v340
        %v355 = vpack.c.b16 %v343, %v342
        %vm368 = vcmask 523264
        %v370 = vsel %vm368, %v285, 0
        %v373 = vsel %vm368, %v287, 0
        %v376 = vsel %vm368, %v289, 0
        %v379 = vsel %vm368, %v291, 0
        %381 = vmatprep.subr.bf16.mxu0 0
        %382 = vmatpush1.bf16.msra.mxu0 %v344
        %383 = vmatprep.subr.bf16.mxu0 0
        %384 = vmatpush1.bf16.msra.mxu0 %v345
        %385 = vmatprep.subr.bf16.mxu0 0
        %386 = vmatpush1.bf16.msra.mxu0 %v346
        %387 = vmatprep.subr.bf16.mxu0 0
        %388 = vmatpush1.bf16.msra.mxu0 %v347
        %389 = vmatprep.subr.bf16.mxu0 0
        %390 = vmatpush1.bf16.msra.mxu0 %v348
        %391 = vmatprep.subr.bf16.mxu0 0
        %392 = vmatpush1.bf16.msra.mxu0 %v349
        %393 = vmatprep.subr.bf16.mxu0 0
        %394 = vmatpush1.bf16.msra.mxu0 %v350
        %395 = vmatprep.subr.bf16.mxu0 0
        %396 = vmatpush1.bf16.msra.mxu0 %v351
        %397 = vmatprep.subr.bf16.mxu0 0
        %398 = vmatpush1.bf16.msra.mxu0 %v352
        %399 = vmatprep.subr.bf16.mxu0 0
        %400 = vmatpush1.bf16.msra.mxu0 %v353
        %401 = vmatprep.subr.bf16.mxu0 0
        %402 = vmatpush1.bf16.msra.mxu0 %v354
        %403 = vmatprep.subr.bf16.mxu0 0
        %404 = vmatpush1.bf16.msra.mxu0 %v355
        %405 = vmatprep.subr.bf16.mxu0 0
        %406 = vmatpush1.bf16.msra.mxu0 0
        %407 = vmatprep.subr.bf16.mxu0 0
        %408 = vmatpush1.bf16.msra.mxu0 0
        %409 = vmatprep.subr.bf16.mxu0 0
        %410 = vmatpush1.bf16.msra.mxu0 0
        %411 = vmatprep.subr.bf16.mxu0 0
        %412 = vmatpush1.bf16.msra.mxu0 0
        %413 = vmatprep.mubr.bf16.mxu0 %v370
        %414 = vmatmul.mubr.bf16.gmra.mrb[0].mxu0 %v284
        %v415 = vpop.f32.mrb[0].mxu0
        %v416 = vadd.f32 %v258, %v415
        %v417 = vpop.f32.mrb[0].mxu0
        %v418 = vpop.f32.mrb[0].mxu0
        %v419 = vadd.f32 %v258, %v418
        %v420 = vpop.f32.mrb[0].mxu0
        %421 = vmatprep.mubr.bf16.mxu0 %v373
        %422 = vmatmul.mubr.bf16.gmra.mrb[0].mxu0 %v286
        %v423 = vpop.f32.mrb[0].mxu0
        %v424 = vadd.f32 %v258, %v423
        %v425 = vpop.f32.mrb[0].mxu0
        %v426 = vpop.f32.mrb[0].mxu0
        %v427 = vadd.f32 %v258, %v426
        %v428 = vpop.f32.mrb[0].mxu0
        %429 = vmatprep.mubr.bf16.mxu0 %v376
        %430 = vmatmul.mubr.bf16.gmra.mrb[0].mxu0 %v288
        %v431 = vpop.f32.mrb[0].mxu0
        %v432 = vadd.f32 %v258, %v431
        %v433 = vpop.f32.mrb[0].mxu0
        %v434 = vpop.f32.mrb[0].mxu0
        %v435 = vadd.f32 %v258, %v434
        %v436 = vpop.f32.mrb[0].mxu0
        %437 = vmatprep.mubr.bf16.mxu0 %v379
        %438 = vmatmul.mubr.bf16.gmra.mrb[0].mxu0 %v290
        %v439 = vpop.f32.mrb[0].mxu0
        %v440 = vadd.f32 %v258, %v439
        %v441 = vpop.f32.mrb[0].mxu0
        %v442 = vpop.f32.mrb[0].mxu0
        %v443 = vadd.f32 %v258, %v442
        %v444 = vpop.f32.mrb[0].mxu0
        %445 = vdwg.mxu0
        %446 = vst [vmem:[%s204] sm:$0xff] %v416
        %447 = vst [vmem:[%s204 + $0x8] sm:$0xff] %v419
        %448 = vst [vmem:[%s204 + $0x10] sm:$0xff] %v424
        %449 = vst [vmem:[%s204 + $0x18] sm:$0xff] %v427
        %450 = vst [vmem:[%s204 + $0x20] sm:$0xff] %v432
        %451 = vst [vmem:[%s204 + $0x28] sm:$0xff] %v435
        %452 = vst [vmem:[%s204 + $0x30] sm:$0xff] %v440
        %453 = vst [vmem:[%s204 + $0x38] sm:$0xff] %v443
        %s454 = sand.u32 %s117, 1
        %s455 = scalar_lea.sflag [#allocation3], %s454
        %s456 = sand.u32 %s117, 1
        %s457 = smul.addr %s456, 64
        %s458 = scalar_lea.vmem [#allocation2], %s457
        // Predicated region
        $region33: #{tpu_custom_call.1} parent=31 // pred_check
          %p459 = pneg %p127
        $region34: #{tpu_custom_call.1} parent=31 // pred_check_branch
          %461 = sbr.rel (%p459) target = $region36
        $region35: #{tpu_custom_call.1} parent=31 // pred_region
          %s462 = smul.u32 8, %s22
          %s464 = ssub.s32 1024, 1024
          %465 = vsyncadd %s455, %s464
          %s466 = sadd.s32 %s21, %s462
          %s467 = smul.addr %s466, 128
          %s468 = scalar_lea.hbm %s3, %s467
          %s469 = sshll.u32 %s458, 4
          %s470 = int_to_ptr.vmem [resolvable:$true] %s469
          %475 = dma.vmem_to_hbm [thread:$0]  %s470, 1024, %s468, %s455, 128, 128, 8
        $region36: #{tpu_custom_call.1} parent=31 // pred_fallthru
          _
      $region32: #{tpu_custom_call.1} parent=5 // pred_fallthru
        _
      %p476 = scmp.le.s32.totalorder 2, %s12
      // Predicated region
      $region37: #{tpu_custom_call.1} parent=5 // pred_check
        %p477 = pneg %p476
      $region38: #{tpu_custom_call.1} parent=5 // pred_check_branch
        %479 = sbr.rel (%p477) target = $region40
      $region39: #{tpu_custom_call.1} parent=5 // pred_region
        %s480 = ssub.s32 %s12, 2
        // Predicated region
        $region41: #{tpu_custom_call.1} parent=39 // pred_check
          %p481 = pneg %p133
        $region42: #{tpu_custom_call.1} parent=39 // pred_check_branch
          %483 = sbr.rel (%p481) target = $region44
        $region43: #{tpu_custom_call.1} parent=39 // pred_region
          %s484 = sand.u32 %s118, 1
          %s485 = scalar_lea.sflag [#allocation3], %s484
          %s486 = sand.u32 %s118, 1
          %s487 = smul.addr %s486, 64
          %s488 = scalar_lea.vmem [#allocation2], %s487
          %489 = dma.done %s485, 1024
        $region44: #{tpu_custom_call.1} parent=39 // pred_fallthru
          _
      $region40: #{tpu_custom_call.1} parent=5 // pred_fallthru
        _
    $region6: #{tpu_custom_call.1} parent=1 // loop_footer
      %s16 = sadd.s32 1, %s12
    $region7: #{tpu_custom_call.1} parent=1 // loop_footer_branch
      %11 = sbr.rel target = $region3
    $region8: #{tpu_custom_call.1} parent=1 // loop_exit
      _
    %490 = vsyncpa [#allocation3], 1
    %s491 = scalar_lea.sflag [#allocation3], 1
    %492 = vsyncpa %s491, 1

</llo_original>
